<compile_context>
chip_gen: v6e
topology: v6e:2x2x1
jax: 0.10.0
libtpu: 0.0.40
codegen_flags: <defaults>
</compile_context>

<pallas_src>
from functools import partial

import jax
import jax.numpy as jnp
from jax.experimental import pallas as pl
from jax.experimental.pallas import tpu as pltpu


def _round_up(n: int, m: int) -> int:
    return ((n + m - 1) // m) * m


def _pad2(a, rows, cols):
    """Pad a 2-D array up to (rows, cols); no-op if already that shape."""
    r, c = a.shape
    if r == rows and c == cols:
        return a
    return jnp.pad(a, ((0, rows - r), (0, cols - c)))


# ------------------------------- kernels -----------------------------------


def _linear_kernel_xy(x_ref, y_ref, wx_ref, wy_ref, b_ref, o_ref):
    # x_ref: (tm, Dxp), y_ref: (tm, Dyp), wx_ref: (Dxp, tn), wy_ref: (Dyp, tn),
    # b_ref: (1, tn) f32, o_ref: (tm, tn)
    acc = jnp.dot(x_ref[...], wx_ref[...], preferred_element_type=jnp.float32)
    acc = acc + jnp.dot(y_ref[...], wy_ref[...], preferred_element_type=jnp.float32)
    o_ref[...] = (acc + b_ref[...]).astype(o_ref.dtype)


def _linear_kernel_x(x_ref, wx_ref, b_ref, o_ref):
    acc = jnp.dot(x_ref[...], wx_ref[...], preferred_element_type=jnp.float32)
    o_ref[...] = (acc + b_ref[...]).astype(o_ref.dtype)


# ------------------------------ Pallas path ---------------------------------


def _pallas_linear(x, w, b, y):
    B, Dx = x.shape
    O = w.shape[0]
    dtype = x.dtype

    LANE, SUB = 128, 8
    tm = min(128, _round_up(B, SUB))        # sublane-aligned M tile
    Bp = _round_up(B, tm)
    tn = 128                                # lane-dense output tile
    Op = _round_up(O, tn)
    Dxp = _round_up(Dx, LANE)               # lane-dense contraction

    # Zero-padding is numerically inert for the matmul / bias add.
    xp = _pad2(x, Bp, Dxp)
    wx = _pad2(jnp.transpose(w[:, :Dx]), Dxp, Op)
    # Keep bias in f32 until the final cast (correct even for bf16 activations).
    bp = _pad2(b.astype(jnp.float32).reshape(1, O), 1, Op)

    grid = (Bp // tm, Op // tn)

    if y is None:
        kernel = _linear_kernel_x
        in_specs = [
            pl.BlockSpec((tm, Dxp), lambda i, j: (i, 0)),
            pl.BlockSpec((Dxp, tn), lambda i, j: (0, j)),
            pl.BlockSpec((1, tn), lambda i, j: (0, j)),
        ]
        operands = (xp, wx, bp)
        k_total = Dxp
    else:
        Dy = y.shape[1]
        Dyp = _round_up(Dy, LANE)
        yp = _pad2(y.astype(dtype), Bp, Dyp)
        wy = _pad2(jnp.transpose(w[:, Dx:]), Dyp, Op)
        kernel = _linear_kernel_xy
        in_specs = [
            pl.BlockSpec((tm, Dxp), lambda i, j: (i, 0)),
            pl.BlockSpec((tm, Dyp), lambda i, j: (i, 0)),
            pl.BlockSpec((Dxp, tn), lambda i, j: (0, j)),
            pl.BlockSpec((Dyp, tn), lambda i, j: (0, j)),
            pl.BlockSpec((1, tn), lambda i, j: (0, j)),
        ]
        operands = (xp, yp, wx, wy, bp)
        k_total = Dxp + Dyp

    bytes_accessed = (
        sum(int(op.size) * jnp.dtype(op.dtype).itemsize for op in operands)
        + Bp * Op * jnp.dtype(dtype).itemsize
    )
    cost = pl.CostEstimate(
        flops=2 * Bp * k_total * Op,
        transcendentals=0,
        bytes_accessed=bytes_accessed,
    )

    # TODO(synk): for very large contraction dims (K >> a few thousand), add a
    # third "arbitrary" K grid axis with an f32 VMEM accumulator + pl.when
    # finalize; at LinearFilter-style K the whole contraction fits one tile.
    out = pl.pallas_call(
        kernel,
        out_shape=jax.ShapeDtypeStruct((Bp, Op), dtype),
        grid=grid,
        in_specs=in_specs,
        out_specs=pl.BlockSpec((tm, tn), lambda i, j: (i, j)),
        compiler_params=pltpu.CompilerParams(
            dimension_semantics=("parallel", "parallel"),
        ),
        cost_estimate=cost,
    )(*operands)
    return out[:B, :O]


# ------------------------------- XLA path -----------------------------------


def _xla_linear(x, w, b, y):
    Dx = x.shape[1]
    o = jnp.dot(x, jnp.transpose(w[:, :Dx])) + b
    if y is not None:
        o = o + jnp.dot(y.astype(x.dtype), jnp.transpose(w[:, Dx:]))
    return o.astype(x.dtype)


# ------------------------------- public API ---------------------------------


@partial(jax.jit, static_argnames=("force_pallas",))
def linear_filter_forward(x, w, b, y=None, *, force_pallas=False):
    """Pallas/JAX equivalent of LinearFilter.forward.

    x: (B, input_dim), y: (B, y_dim) or None
    w: (output_dim, input_dim + y_dim)  -- PyTorch nn.Linear weight layout
    b: (output_dim,)
    returns: (B, output_dim)
    """
    B, Dx = x.shape
    Dy = 0 if y is None else y.shape[1]
    O = w.shape[0]
    # Tiny problems are pure pallas_call overhead -> let XLA fuse dot+add.
    use_pallas = force_pallas or (B * (Dx + Dy) * O > 1_000_000)
    if use_pallas:
        return _pallas_linear(x, w, b, y)
    return _xla_linear(x, w, b, y)


def _torch_like_linear_init(key, in_features, out_features, dtype=jnp.float32):
    # Deterministic init mimicking nn.Linear default: U(-1/sqrt(in), 1/sqrt(in))
    kw, kb = jax.random.split(key)
    bound = 1.0 / jnp.sqrt(jnp.float32(in_features))
    w = jax.random.uniform(kw, (out_features, in_features), dtype, -bound, bound)
    b = jax.random.uniform(kb, (out_features,), dtype, -bound, bound)
    return w, b


if __name__ == "__main__":
    # Module config (defaults-consistent): input_dim=10, y_dim=6, output_dim=10
    input_dim, y_dim, output_dim = 10, 6, 10
    batch = 8

    key = jax.random.PRNGKey(0)
    k_x, k_y, k_p = jax.random.split(key, 3)

    x = jax.random.normal(k_x, (batch, input_dim), jnp.float32)
    # y: one-hot encoded discrete labels
    labels = jax.random.randint(k_y, (batch,), 0, y_dim)
    y = jax.nn.one_hot(labels, y_dim, dtype=jnp.float32)

    w, b = _torch_like_linear_init(k_p, input_dim + y_dim, output_dim)
    w0, b0 = _torch_like_linear_init(k_p, input_dim, output_dim)

    # --- Pallas kernel path (forced; default heuristic routes tiny shapes to XLA)
    out_xy = jax.block_until_ready(
        linear_filter_forward(x, w, b, y, force_pallas=True)
    )
    out_x = jax.block_until_ready(
        linear_filter_forward(x, w0, b0, None, force_pallas=True)
    )

    # --- Default path (XLA fused dot+add at these small sizes)
    out_xy_default = jax.block_until_ready(linear_filter_forward(x, w, b, y))

    # Sanity checks against plain-JAX reference of the PyTorch module semantics
    ref_xy = jnp.concatenate([x, y], axis=1) @ w.T + b
    ref_x = x @ w0.T + b0
    assert out_xy.shape == (batch, output_dim)
    assert out_x.shape == (batch, output_dim)
    assert jnp.allclose(out_xy, ref_xy, atol=1e-5), "pallas xy path mismatch"
    assert jnp.allclose(out_x, ref_x, atol=1e-5), "pallas x-only path mismatch"
    assert jnp.allclose(out_xy_default, ref_xy, atol=1e-5), "xla path mismatch"

    print("KERNEL_OK")
</pallas_src>

<mosaic_0001>
module attributes {stable_mosaic.version = 11 : i64} {
  func.func @_linear_kernel_xy(%arg0: i32, %arg1: i32, %arg2: memref<8x128xf32, #tpu.memory_space<vmem>>, %arg3: memref<8x128xf32, #tpu.memory_space<vmem>>, %arg4: memref<128x128xf32, #tpu.memory_space<vmem>>, %arg5: memref<128x128xf32, #tpu.memory_space<vmem>>, %arg6: memref<1x128xf32, #tpu.memory_space<vmem>>, %arg7: memref<8x128xf32, #tpu.memory_space<vmem>>) attributes {dimension_semantics = [#tpu.dimension_semantics<parallel>, #tpu.dimension_semantics<parallel>], iteration_bounds = array<i64: 1, 1>, scalar_prefetch = 0 : i64, scratch_operands = 0 : i64, tpu.core_type = #tpu.core_type<tc>, window_params = [{transform_indices = @transform_0, window_bounds = array<i64: 8, 128>}, {transform_indices = @transform_1, window_bounds = array<i64: 8, 128>}, {transform_indices = @transform_2, window_bounds = array<i64: 128, 128>}, {transform_indices = @transform_3, window_bounds = array<i64: 128, 128>}, {transform_indices = @transform_4, window_bounds = array<i64: 1, 128>}, {transform_indices = @transform_5, window_bounds = array<i64: 8, 128>}]} {
    %c0 = arith.constant 0 : index
    %c0_0 = arith.constant 0 : index
    %0 = vector.load %arg2[%c0, %c0_0] : memref<8x128xf32, #tpu.memory_space<vmem>>, vector<8x128xf32>
    %c0_1 = arith.constant 0 : index
    %c0_2 = arith.constant 0 : index
    %1 = vector.load %arg4[%c0_1, %c0_2] : memref<128x128xf32, #tpu.memory_space<vmem>>, vector<128x128xf32>
    %cst = arith.constant dense<0.000000e+00> : vector<8x128xf32>
    %2 = tpu.matmul %0, %1, %cst {dimension_numbers = #tpu.dot_dimension_numbers<[1], [0], [0], [1], [0, 0, 1, 1], [], []>} : vector<8x128xf32>, vector<128x128xf32>, vector<8x128xf32> -> vector<8x128xf32>
    %c0_3 = arith.constant 0 : index
    %c0_4 = arith.constant 0 : index
    %3 = vector.load %arg3[%c0_3, %c0_4] : memref<8x128xf32, #tpu.memory_space<vmem>>, vector<8x128xf32>
    %c0_5 = arith.constant 0 : index
    %c0_6 = arith.constant 0 : index
    %4 = vector.load %arg5[%c0_5, %c0_6] : memref<128x128xf32, #tpu.memory_space<vmem>>, vector<128x128xf32>
    %cst_7 = arith.constant dense<0.000000e+00> : vector<8x128xf32>
    %5 = tpu.matmul %3, %4, %cst_7 {dimension_numbers = #tpu.dot_dimension_numbers<[1], [0], [0], [1], [0, 0, 1, 1], [], []>} : vector<8x128xf32>, vector<128x128xf32>, vector<8x128xf32> -> vector<8x128xf32>
    %6 = arith.addf %2, %5 : vector<8x128xf32>
    %c0_8 = arith.constant 0 : index
    %c0_9 = arith.constant 0 : index
    %7 = vector.load %arg6[%c0_8, %c0_9] : memref<1x128xf32, #tpu.memory_space<vmem>>, vector<1x128xf32>
    %8 = vector.broadcast %7 : vector<1x128xf32> to vector<8x128xf32>
    %9 = arith.addf %6, %8 : vector<8x128xf32>
    %c0_10 = arith.constant 0 : index
    %c0_11 = arith.constant 0 : index
    %10 = vector.load %arg7[%c0_10, %c0_11] : memref<8x128xf32, #tpu.memory_space<vmem>>, vector<8x128xf32>
    tpu.vector_store %arg7[%c0_10, %c0_11], %9 {strides = array<i32>} : memref<8x128xf32, #tpu.memory_space<vmem>>, vector<8x128xf32>,
    return
  }
  func.func @transform_0(%arg0: i32, %arg1: i32) -> (i32, i32) {
    %c0_i32 = arith.constant 0 : i32
    %c0_i32_0 = arith.constant 0 : i32
    return %arg0, %c0_i32 : i32, i32
  }
  func.func @transform_1(%arg0: i32, %arg1: i32) -> (i32, i32) {
    %c0_i32 = arith.constant 0 : i32
    %c0_i32_0 = arith.constant 0 : i32
    return %arg0, %c0_i32 : i32, i32
  }
  func.func @transform_2(%arg0: i32, %arg1: i32) -> (i32, i32) {
    %c0_i32 = arith.constant 0 : i32
    %c0_i32_0 = arith.constant 0 : i32
    return %c0_i32, %arg1 : i32, i32
  }
  func.func @transform_3(%arg0: i32, %arg1: i32) -> (i32, i32) {
    %c0_i32 = arith.constant 0 : i32
    %c0_i32_0 = arith.constant 0 : i32
    return %c0_i32, %arg1 : i32, i32
  }
  func.func @transform_4(%arg0: i32, %arg1: i32) -> (i32, i32) {
    %c0_i32 = arith.constant 0 : i32
    %c0_i32_0 = arith.constant 0 : i32
    return %c0_i32, %arg1 : i32, i32
  }
  func.func @transform_5(%arg0: i32, %arg1: i32) -> (i32, i32) {
    %c0_i32 = arith.constant 0 : i32
    return %arg0, %arg1 : i32, i32
  }
}

</mosaic_0001>

<llo_original>
// kernel: linear_filter_forward.1
$region0: #{linear_filter_forward.1}
  #allocation0 [shape = 'u32[]', space=smem, size = 0x4, offset = 0x4, fixed_abs, tag = 'smem constant byte address 0x4 - core index']
  #allocation1 [shape = 'u32[144,128]{1,0:T(1,128)}', space=vmem, size = 0x12000, scoped, tag = 'internal scratch']
  %s0 = inlined_call_operand.vmem [shape: f32[8,128], index: 0, kind: input, shape index: {}]
  %s1 = inlined_call_operand.vmem [shape: f32[8,128], index: 1, kind: input, shape index: {}]
  %s2 = inlined_call_operand.vmem [shape: f32[128,128], index: 2, kind: input, shape index: {}]
  %s3 = inlined_call_operand.vmem [shape: f32[128,128], index: 3, kind: input, shape index: {}]
  %s4 = inlined_call_operand.vmem [shape: f32[1,128], index: 4, kind: input, shape index: {}]
  %s5 = inlined_call_operand.hbm [shape: f32[8,128], index: 5, kind: output, shape index: {}]
  %s6 = sld [smem:[#allocation0]]
  $region30: #{linear_filter_forward.1} parent=0
    _
  %s8 = ssub.s32 1, %s6
  %s9 = scalar_select 0, %s8, %s6
  $region1: #{linear_filter_forward.1} parent=0
    #allocation2 [shape = 'u8[4096]{0}', space=vmem, size = 0x1000, scoped, tag = 'output window, operand 0, single buffered']
    #allocation3 [shape = 's32[1]{0}', space=sflag, size = 0x4, scoped, tag = 'scoped memory for linear_filter_forward.1']
    %10 = vsyncpa [#allocation3], 0
    // Predicated region
    $region2: #{linear_filter_forward.1} parent=1 // pred_check
      _
    $region3: #{linear_filter_forward.1} parent=1 // pred_check_branch
      %12 = sbr.rel (0) target = $region5
    $region4: #{linear_filter_forward.1} parent=1 // pred_region
      _
    $region5: #{linear_filter_forward.1} parent=1 // pred_fallthru
      _
    // Predicated region
    $region6: #{linear_filter_forward.1} parent=1 // pred_check
      _
    $region7: #{linear_filter_forward.1} parent=1 // pred_check_branch
      %14 = sbr.rel (0) target = $region9
    $region8: #{linear_filter_forward.1} parent=1 // pred_region
      _
    $region9: #{linear_filter_forward.1} parent=1 // pred_fallthru
      _
    // Predicated region
    $region10: #{linear_filter_forward.1} parent=1 // pred_check
      _
    $region11: #{linear_filter_forward.1} parent=1 // pred_check_branch
      %16 = sbr.rel (0) target = $region13
    $region12: #{linear_filter_forward.1} parent=1 // pred_region
      _
    $region13: #{linear_filter_forward.1} parent=1 // pred_fallthru
      _
    // Predicated region
    $region14: #{linear_filter_forward.1} parent=1 // pred_check
      _
    $region15: #{linear_filter_forward.1} parent=1 // pred_check_branch
      %18 = sbr.rel (0) target = $region17
    $region16: #{linear_filter_forward.1} parent=1 // pred_region
      _
    $region17: #{linear_filter_forward.1} parent=1 // pred_fallthru
      _
    // Predicated region
    $region18: #{linear_filter_forward.1} parent=1 // pred_check
      _
    $region19: #{linear_filter_forward.1} parent=1 // pred_check_branch
      %20 = sbr.rel (0) target = $region21
    $region20: #{linear_filter_forward.1} parent=1 // pred_region
      _
    $region21: #{linear_filter_forward.1} parent=1 // pred_fallthru
      _
    %v21 = vld [vmem:[%s0] sm:$0xff]
    %v22 = vld [vmem:[%s2] sm:$0xff]
    %v23 = vld [vmem:[%s2 + $0x8] sm:$0xff]
    %v24 = vld [vmem:[%s2 + $0x10] sm:$0xff]
    %v25 = vld [vmem:[%s2 + $0x18] sm:$0xff]
    %v26 = vld [vmem:[%s2 + $0x20] sm:$0xff]
    %v27 = vld [vmem:[%s2 + $0x28] sm:$0xff]
    %v28 = vld [vmem:[%s2 + $0x30] sm:$0xff]
    %v29 = vld [vmem:[%s2 + $0x38] sm:$0xff]
    %v30 = vld [vmem:[%s2 + $0x40] sm:$0xff]
    %v31 = vld [vmem:[%s2 + $0x48] sm:$0xff]
    %v32 = vld [vmem:[%s2 + $0x50] sm:$0xff]
    %v33 = vld [vmem:[%s2 + $0x58] sm:$0xff]
    %v34 = vld [vmem:[%s2 + $0x60] sm:$0xff]
    %v35 = vld [vmem:[%s2 + $0x68] sm:$0xff]
    %v36 = vld [vmem:[%s2 + $0x70] sm:$0xff]
    %v37 = vld [vmem:[%s2 + $0x78] sm:$0xff]
    %v38 = vld [vmem:[%s1] sm:$0xff]
    %v39 = vld [vmem:[%s3] sm:$0xff]
    %v40 = vld [vmem:[%s3 + $0x8] sm:$0xff]
    %v41 = vld [vmem:[%s3 + $0x10] sm:$0xff]
    %v42 = vld [vmem:[%s3 + $0x18] sm:$0xff]
    %v43 = vld [vmem:[%s3 + $0x20] sm:$0xff]
    %v44 = vld [vmem:[%s3 + $0x28] sm:$0xff]
    %v45 = vld [vmem:[%s3 + $0x30] sm:$0xff]
    %v46 = vld [vmem:[%s3 + $0x38] sm:$0xff]
    %v47 = vld [vmem:[%s3 + $0x40] sm:$0xff]
    %v48 = vld [vmem:[%s3 + $0x48] sm:$0xff]
    %v49 = vld [vmem:[%s3 + $0x50] sm:$0xff]
    %v50 = vld [vmem:[%s3 + $0x58] sm:$0xff]
    %v51 = vld [vmem:[%s3 + $0x60] sm:$0xff]
    %v52 = vld [vmem:[%s3 + $0x68] sm:$0xff]
    %v53 = vld [vmem:[%s3 + $0x70] sm:$0xff]
    %v54 = vld [vmem:[%s3 + $0x78] sm:$0xff]
    %55 = vmatprep.subr.mxu0 0.0
    %56 = vmatpush1.msra.mxu0 %v54
    %57 = vmatprep.subr.mxu0 0.0
    %58 = vmatpush1.msra.mxu0 %v53
    %59 = vmatprep.subr.mxu0 0.0
    %60 = vmatpush1.msra.mxu0 %v52
    %61 = vmatprep.subr.mxu0 0.0
    %62 = vmatpush1.msra.mxu0 %v51
    %63 = vmatprep.subr.mxu0 0.0
    %64 = vmatpush1.msra.mxu0 %v50
    %65 = vmatprep.subr.mxu0 0.0
    %66 = vmatpush1.msra.mxu0 %v49
    %67 = vmatprep.subr.mxu0 0.0
    %68 = vmatpush1.msra.mxu0 %v48
    %69 = vmatprep.subr.mxu0 0.0
    %70 = vmatpush1.msra.mxu0 %v47
    %71 = vmatprep.subr.mxu0 0.0
    %72 = vmatpush1.msra.mxu0 %v46
    %73 = vmatprep.subr.mxu0 0.0
    %74 = vmatpush1.msra.mxu0 %v45
    %75 = vmatprep.subr.mxu0 0.0
    %76 = vmatpush1.msra.mxu0 %v44
    %77 = vmatprep.subr.mxu0 0.0
    %78 = vmatpush1.msra.mxu0 %v43
    %79 = vmatprep.subr.mxu0 0.0
    %80 = vmatpush1.msra.mxu0 %v42
    %81 = vmatprep.subr.mxu0 0.0
    %82 = vmatpush1.msra.mxu0 %v41
    %83 = vmatprep.subr.mxu0 0.0
    %84 = vmatpush1.msra.mxu0 %v40
    %85 = vmatprep.subr.mxu0 0.0
    %86 = vmatpush1.msra.mxu0 %v39
    %87 = vmatprep.subr.mxu0 0.0
    %88 = vmatpush2.msra.mxu0 0.0
    %89 = vmatprep.subr.mxu0 0.0
    %90 = vmatpush2.msra.mxu0 0.0
    %91 = vmatprep.subr.mxu0 0.0
    %92 = vmatpush2.msra.mxu0 0.0
    %93 = vmatprep.subr.mxu0 0.0
    %94 = vmatpush2.msra.mxu0 0.0
    %95 = vmatprep.subr.mxu0 0.0
    %96 = vmatpush2.msra.mxu0 0.0
    %97 = vmatprep.subr.mxu0 0.0
    %98 = vmatpush2.msra.mxu0 0.0
    %99 = vmatprep.subr.mxu0 0.0
    %100 = vmatpush2.msra.mxu0 0.0
    %101 = vmatprep.subr.mxu0 0.0
    %102 = vmatpush2.msra.mxu0 0.0
    %103 = vmatprep.subr.mxu0 0.0
    %104 = vmatpush2.msra.mxu0 0.0
    %105 = vmatprep.subr.mxu0 0.0
    %106 = vmatpush2.msra.mxu0 0.0
    %107 = vmatprep.subr.mxu0 0.0
    %108 = vmatpush2.msra.mxu0 0.0
    %109 = vmatprep.subr.mxu0 0.0
    %110 = vmatpush2.msra.mxu0 0.0
    %111 = vmatprep.subr.mxu0 0.0
    %112 = vmatpush2.msra.mxu0 0.0
    %113 = vmatprep.subr.mxu0 0.0
    %114 = vmatpush2.msra.mxu0 0.0
    %115 = vmatprep.subr.mxu0 0.0
    %116 = vmatpush2.msra.mxu0 0.0
    %117 = vmatprep.subr.mxu0 0.0
    %118 = vmatpush2.msra.mxu0 0.0
    %119 = vmatprep.mubr.f32.mxu0 0.0
    %120 = vmatmul.mubr.f32.gmra.mxu0 %v38
    %v121 = vpop.f32.mrf.mxu0
    %v122 = vadd.f32 0.0, %v121
    %v123 = vpop.f32.mrf.mxu0
    %124 = vdwg.mxu0
    %125 = vmatprep.subr.mxu0 0.0
    %126 = vmatpush1.msra.mxu0 %v37
    %127 = vmatprep.subr.mxu0 0.0
    %128 = vmatpush1.msra.mxu0 %v36
    %129 = vmatprep.subr.mxu0 0.0
    %130 = vmatpush1.msra.mxu0 %v35
    %131 = vmatprep.subr.mxu0 0.0
    %132 = vmatpush1.msra.mxu0 %v34
    %133 = vmatprep.subr.mxu0 0.0
    %134 = vmatpush1.msra.mxu0 %v33
    %135 = vmatprep.subr.mxu0 0.0
    %136 = vmatpush1.msra.mxu0 %v32
    %137 = vmatprep.subr.mxu0 0.0
    %138 = vmatpush1.msra.mxu0 %v31
    %139 = vmatprep.subr.mxu0 0.0
    %140 = vmatpush1.msra.mxu0 %v30
    %141 = vmatprep.subr.mxu0 0.0
    %142 = vmatpush1.msra.mxu0 %v29
    %143 = vmatprep.subr.mxu0 0.0
    %144 = vmatpush1.msra.mxu0 %v28
    %145 = vmatprep.subr.mxu0 0.0
    %146 = vmatpush1.msra.mxu0 %v27
    %147 = vmatprep.subr.mxu0 0.0
    %148 = vmatpush1.msra.mxu0 %v26
    %149 = vmatprep.subr.mxu0 0.0
    %150 = vmatpush1.msra.mxu0 %v25
    %151 = vmatprep.subr.mxu0 0.0
    %152 = vmatpush1.msra.mxu0 %v24
    %153 = vmatprep.subr.mxu0 0.0
    %154 = vmatpush1.msra.mxu0 %v23
    %155 = vmatprep.subr.mxu0 0.0
    %156 = vmatpush1.msra.mxu0 %v22
    %157 = vmatprep.subr.mxu0 0.0
    %158 = vmatpush2.msra.mxu0 0.0
    %159 = vmatprep.subr.mxu0 0.0
    %160 = vmatpush2.msra.mxu0 0.0
    %161 = vmatprep.subr.mxu0 0.0
    %162 = vmatpush2.msra.mxu0 0.0
    %163 = vmatprep.subr.mxu0 0.0
    %164 = vmatpush2.msra.mxu0 0.0
    %165 = vmatprep.subr.mxu0 0.0
    %166 = vmatpush2.msra.mxu0 0.0
    %167 = vmatprep.subr.mxu0 0.0
    %168 = vmatpush2.msra.mxu0 0.0
    %169 = vmatprep.subr.mxu0 0.0
    %170 = vmatpush2.msra.mxu0 0.0
    %171 = vmatprep.subr.mxu0 0.0
    %172 = vmatpush2.msra.mxu0 0.0
    %173 = vmatprep.subr.mxu0 0.0
    %174 = vmatpush2.msra.mxu0 0.0
    %175 = vmatprep.subr.mxu0 0.0
    %176 = vmatpush2.msra.mxu0 0.0
    %177 = vmatprep.subr.mxu0 0.0
    %178 = vmatpush2.msra.mxu0 0.0
    %179 = vmatprep.subr.mxu0 0.0
    %180 = vmatpush2.msra.mxu0 0.0
    %181 = vmatprep.subr.mxu0 0.0
    %182 = vmatpush2.msra.mxu0 0.0
    %183 = vmatprep.subr.mxu0 0.0
    %184 = vmatpush2.msra.mxu0 0.0
    %185 = vmatprep.subr.mxu0 0.0
    %186 = vmatpush2.msra.mxu0 0.0
    %187 = vmatprep.subr.mxu0 0.0
    %188 = vmatpush2.msra.mxu0 0.0
    %189 = vmatprep.mubr.f32.mxu0 0.0
    %190 = vmatmul.mubr.f32.gmra.mxu0 %v21
    %v191 = vpop.f32.mrf.mxu0
    %v192 = vadd.f32 %v122, %v191
    %v193 = vpop.f32.mrf.mxu0
    %194 = vdwg.mxu0
    %v195 = vld [vmem:[%s4] sm:$0x1]
    %v197 = vlaneseq
    %v198 = vshrl.u32 %v197, 7
    %v199 = vsub.s32 0, %v198
    %v200 = vrot.slane %v195, %v199
    %v202 = vadd.f32 %v192, %v200
    %203 = vst [vmem:[#allocation2] sm:$0xff] %v202
    // Predicated region
    $region22: #{linear_filter_forward.1} parent=1 // pred_check
      _
    $region23: #{linear_filter_forward.1} parent=1 // pred_check_branch
      %205 = sbr.rel (0) target = $region25
    $region24: #{linear_filter_forward.1} parent=1 // pred_region
      %s207 = ssub.s32 128, 128
      %208 = vsyncadd [#allocation3], %s207
      %s210 = sshll.u32 [#allocation2], 4
      %s211 = int_to_ptr.vmem [resolvable:$true] %s210
      %213 = dma.vmem_to_hbm [thread:$0]  %s211, 128, %s5, [#allocation3]
    $region25: #{linear_filter_forward.1} parent=1 // pred_fallthru
      _
    // Predicated region
    $region26: #{linear_filter_forward.1} parent=1 // pred_check
      _
    $region27: #{linear_filter_forward.1} parent=1 // pred_check_branch
      %215 = sbr.rel (0) target = $region29
    $region28: #{linear_filter_forward.1} parent=1 // pred_region
      %216 = dma.done [#allocation3], 128
    $region29: #{linear_filter_forward.1} parent=1 // pred_fallthru
      _
    %217 = vsyncpa [#allocation3], 1

</llo_original>
